<compile_context>
chip_gen: v5e
topology: v5e:2x2
jax: 0.10.0
libtpu: 0.0.40
codegen_flags: <defaults>
</compile_context>

<pallas_src>
import math

import jax
import jax.numpy as jnp
from jax.experimental import pallas as pl
from jax.experimental.pallas import tpu as pltpu

F32 = jnp.float32
BN_EPS = 1e-5  # PyTorch nn.BatchNorm1d default eps


# ---------------------------------------------------------------------------
# BatchNorm folding (plain JAX, traced once — fuses into XLA around the kernel)
# ---------------------------------------------------------------------------
def _fold_bn(W, b, gamma, beta, mean, var, eps=BN_EPS):
    """Fold eval-mode BatchNorm1d into the preceding Linear.

    BN(xW + b) == x (W * s) + ((b - mean) * s + beta), s = gamma / sqrt(var + eps).
    """
    scale = gamma * jax.lax.rsqrt(var + eps)          # (N,)
    return W * scale[None, :], (b - mean) * scale + beta


# ---------------------------------------------------------------------------
# Fused MLP kernel: relu(BN(L1 x)) -> relu(BN(L2 .)) -> relu(L3 .)
# (BN already folded into W/b, so body = 3x (matmul + bias + relu))
# ---------------------------------------------------------------------------
def _recnet_kernel(x_ref, w1_ref, b1_ref, w2_ref, b2_ref, w3_ref, b3_ref, o_ref):
    h = jnp.dot(x_ref[...], w1_ref[...], preferred_element_type=jnp.float32) + b1_ref[...]
    h = jnp.maximum(h, 0.0)
    h = jnp.dot(h, w2_ref[...], preferred_element_type=jnp.float32) + b2_ref[...]
    h = jnp.maximum(h, 0.0)
    h = jnp.dot(h, w3_ref[...], preferred_element_type=jnp.float32) + b3_ref[...]
    o_ref[...] = jnp.maximum(h, 0.0)


def uni_reconstruct_forward(params, x, *, output_dim, seq_len, tm=128):
    """x: (B, input_dim) float32 -> (B, seq_len, output_dim) float32."""
    x = x.astype(F32)
    M, Din = x.shape
    H1 = params["l1"]["W"].shape[1]                   # 512
    H2 = params["l2"]["W"].shape[1]                   # 256
    Dout = output_dim * seq_len

    # Fold the two BatchNorms into the Linears (cheap, done in XLA).
    W1, b1 = _fold_bn(params["l1"]["W"], params["l1"]["b"], **params["bn1"])
    W2, b2 = _fold_bn(params["l2"]["W"], params["l2"]["b"], **params["bn2"])
    W3, b3 = params["l3"]["W"], params["l3"]["b"]

    # Tile the batch dimension; weights are small enough to stay whole in VMEM.
    grid_m = pl.cdiv(M, tm)
    if grid_m == 1:
        tm = M                                        # block == full dim, no padding

    x_spec = pl.BlockSpec((tm, Din), lambda i: (i, 0))
    o_spec = pl.BlockSpec((tm, Dout), lambda i: (i, 0))

    def whole(shape):
        return pl.BlockSpec(shape, lambda i: (0, 0))

    out = pl.pallas_call(
        _recnet_kernel,
        grid=(grid_m,),
        in_specs=[
            x_spec,
            whole((Din, H1)), whole((1, H1)),
            whole((H1, H2)), whole((1, H2)),
            whole((H2, Dout)), whole((1, Dout)),
        ],
        out_specs=o_spec,
        out_shape=jax.ShapeDtypeStruct((M, Dout), F32),
        compiler_params=pltpu.CompilerParams(
            dimension_semantics=("parallel",)),       # megacore-shardable on v7x
    )(x, W1, b1.reshape(1, H1), W2, b2.reshape(1, H2), W3, b3.reshape(1, Dout))

    return out.reshape(-1, seq_len, output_dim)


# ---------------------------------------------------------------------------
# Pure-JAX reference (unfolded BN) for a correctness check
# ---------------------------------------------------------------------------
def reference_forward(params, x, *, output_dim, seq_len):
    def bn(h, p):
        return (h - p["mean"]) * jax.lax.rsqrt(p["var"] + BN_EPS) * p["gamma"] + p["beta"]

    h = x @ params["l1"]["W"] + params["l1"]["b"]
    h = jnp.maximum(bn(h, params["bn1"]), 0.0)
    h = h @ params["l2"]["W"] + params["l2"]["b"]
    h = jnp.maximum(bn(h, params["bn2"]), 0.0)
    h = h @ params["l3"]["W"] + params["l3"]["b"]
    h = jnp.maximum(h, 0.0)
    return h.reshape(-1, seq_len, output_dim)


# ---------------------------------------------------------------------------
# Deterministic synthetic parameters (PyTorch-style init ranges)
# ---------------------------------------------------------------------------
def _make_linear(key, din, dout):
    k1, k2 = jax.random.split(key)
    s = 1.0 / math.sqrt(din)
    return dict(W=jax.random.uniform(k1, (din, dout), F32, -s, s),
                b=jax.random.uniform(k2, (dout,), F32, -s, s))


def _make_bn(key, dim):
    k1, k2, k3, k4 = jax.random.split(key, 4)
    return dict(gamma=1.0 + 0.1 * jax.random.normal(k1, (dim,), F32),
                beta=0.1 * jax.random.normal(k2, (dim,), F32),
                mean=0.05 * jax.random.normal(k3, (dim,), F32),   # running_mean
                var=1.0 + 0.1 * jax.random.uniform(k4, (dim,), F32))  # running_var


def init_model(key, input_dim, output_dim, seq_len):
    ks = jax.random.split(key, 5)
    return dict(
        l1=_make_linear(ks[0], input_dim, 512), bn1=_make_bn(ks[1], 512),
        l2=_make_linear(ks[2], 512, 256),       bn2=_make_bn(ks[3], 256),
        l3=_make_linear(ks[4], 256, output_dim * seq_len),
    )


# ---------------------------------------------------------------------------
if __name__ == "__main__":
    input_dim, output_dim, seq_len = 32, 16, 8
    B = 4

    key = jax.random.PRNGKey(0)
    kx, kp = jax.random.split(key)
    x = jax.random.normal(kx, (B, input_dim), F32)
    params = init_model(kp, input_dim, output_dim, seq_len)

    fwd = jax.jit(lambda p, x: uni_reconstruct_forward(
        p, x, output_dim=output_dim, seq_len=seq_len))
    out = jax.block_until_ready(fwd(params, x))

    ref = reference_forward(params, x, output_dim=output_dim, seq_len=seq_len)

    assert out.shape == (B, seq_len, output_dim), out.shape
    assert jnp.allclose(out, ref, atol=1e-4, rtol=1e-4), float(jnp.max(jnp.abs(out - ref)))
    print("KERNEL_OK")
</pallas_src>

<mosaic_0001>
module attributes {stable_mosaic.version = 11 : i64} {
  func.func @_recnet_kernel(%arg0: i32, %arg1: memref<4x32xf32, #tpu.memory_space<vmem>>, %arg2: memref<32x512xf32, #tpu.memory_space<vmem>>, %arg3: memref<1x512xf32, #tpu.memory_space<vmem>>, %arg4: memref<512x256xf32, #tpu.memory_space<vmem>>, %arg5: memref<1x256xf32, #tpu.memory_space<vmem>>, %arg6: memref<256x128xf32, #tpu.memory_space<vmem>>, %arg7: memref<1x128xf32, #tpu.memory_space<vmem>>, %arg8: memref<4x128xf32, #tpu.memory_space<vmem>>) attributes {dimension_semantics = [#tpu.dimension_semantics<parallel>], iteration_bounds = array<i64: 1>, scalar_prefetch = 0 : i64, scratch_operands = 0 : i64, tpu.core_type = #tpu.core_type<tc>, window_params = [{transform_indices = @transform_0, window_bounds = array<i64: 4, 32>}, {pipeline_mode = #tpu.pipeline_mode<synchronous>, transform_indices = @transform_1, window_bounds = array<i64: 32, 512>}, {pipeline_mode = #tpu.pipeline_mode<synchronous>, transform_indices = @transform_2, window_bounds = array<i64: 1, 512>}, {pipeline_mode = #tpu.pipeline_mode<synchronous>, transform_indices = @transform_3, window_bounds = array<i64: 512, 256>}, {pipeline_mode = #tpu.pipeline_mode<synchronous>, transform_indices = @transform_4, window_bounds = array<i64: 1, 256>}, {pipeline_mode = #tpu.pipeline_mode<synchronous>, transform_indices = @transform_5, window_bounds = array<i64: 256, 128>}, {pipeline_mode = #tpu.pipeline_mode<synchronous>, transform_indices = @transform_6, window_bounds = array<i64: 1, 128>}, {transform_indices = @transform_7, window_bounds = array<i64: 4, 128>}]} {
    %c0 = arith.constant 0 : index
    %c0_0 = arith.constant 0 : index
    %0 = vector.load %arg1[%c0, %c0_0] : memref<4x32xf32, #tpu.memory_space<vmem>>, vector<4x32xf32>
    %c0_1 = arith.constant 0 : index
    %c0_2 = arith.constant 0 : index
    %1 = vector.load %arg2[%c0_1, %c0_2] : memref<32x512xf32, #tpu.memory_space<vmem>>, vector<32x512xf32>
    %cst = arith.constant dense<0.000000e+00> : vector<4x512xf32>
    %2 = tpu.matmul %0, %1, %cst {dimension_numbers = #tpu.dot_dimension_numbers<[1], [0], [0], [1], [0, 0, 1, 1], [], []>} : vector<4x32xf32>, vector<32x512xf32>, vector<4x512xf32> -> vector<4x512xf32>
    %c0_3 = arith.constant 0 : index
    %c0_4 = arith.constant 0 : index
    %3 = vector.load %arg3[%c0_3, %c0_4] : memref<1x512xf32, #tpu.memory_space<vmem>>, vector<1x512xf32>
    %4 = vector.broadcast %3 : vector<1x512xf32> to vector<4x512xf32>
    %5 = arith.addf %2, %4 : vector<4x512xf32>
    %cst_5 = arith.constant 0.000000e+00 : f32
    %6 = vector.broadcast %cst_5 : f32 to vector<4x512xf32>
    %7 = arith.maximumf %5, %6 : vector<4x512xf32>
    %c0_6 = arith.constant 0 : index
    %c0_7 = arith.constant 0 : index
    %8 = vector.load %arg4[%c0_6, %c0_7] : memref<512x256xf32, #tpu.memory_space<vmem>>, vector<512x256xf32>
    %cst_8 = arith.constant dense<0.000000e+00> : vector<4x256xf32>
    %9 = tpu.matmul %7, %8, %cst_8 {dimension_numbers = #tpu.dot_dimension_numbers<[1], [0], [0], [1], [0, 0, 1, 1], [], []>} : vector<4x512xf32>, vector<512x256xf32>, vector<4x256xf32> -> vector<4x256xf32>
    %c0_9 = arith.constant 0 : index
    %c0_10 = arith.constant 0 : index
    %10 = vector.load %arg5[%c0_9, %c0_10] : memref<1x256xf32, #tpu.memory_space<vmem>>, vector<1x256xf32>
    %11 = vector.broadcast %10 : vector<1x256xf32> to vector<4x256xf32>
    %12 = arith.addf %9, %11 : vector<4x256xf32>
    %cst_11 = arith.constant 0.000000e+00 : f32
    %13 = vector.broadcast %cst_11 : f32 to vector<4x256xf32>
    %14 = arith.maximumf %12, %13 : vector<4x256xf32>
    %c0_12 = arith.constant 0 : index
    %c0_13 = arith.constant 0 : index
    %15 = vector.load %arg6[%c0_12, %c0_13] : memref<256x128xf32, #tpu.memory_space<vmem>>, vector<256x128xf32>
    %cst_14 = arith.constant dense<0.000000e+00> : vector<4x128xf32>
    %16 = tpu.matmul %14, %15, %cst_14 {dimension_numbers = #tpu.dot_dimension_numbers<[1], [0], [0], [1], [0, 0, 1, 1], [], []>} : vector<4x256xf32>, vector<256x128xf32>, vector<4x128xf32> -> vector<4x128xf32>
    %c0_15 = arith.constant 0 : index
    %c0_16 = arith.constant 0 : index
    %17 = vector.load %arg7[%c0_15, %c0_16] : memref<1x128xf32, #tpu.memory_space<vmem>>, vector<1x128xf32>
    %18 = vector.broadcast %17 : vector<1x128xf32> to vector<4x128xf32>
    %19 = arith.addf %16, %18 : vector<4x128xf32>
    %cst_17 = arith.constant 0.000000e+00 : f32
    %20 = vector.broadcast %cst_17 : f32 to vector<4x128xf32>
    %21 = arith.maximumf %19, %20 : vector<4x128xf32>
    %c0_18 = arith.constant 0 : index
    %c0_19 = arith.constant 0 : index
    %22 = vector.load %arg8[%c0_18, %c0_19] : memref<4x128xf32, #tpu.memory_space<vmem>>, vector<4x128xf32>
    tpu.vector_store %arg8[%c0_18, %c0_19], %21 {strides = array<i32>} : memref<4x128xf32, #tpu.memory_space<vmem>>, vector<4x128xf32>,
    return
  }
  func.func @transform_0(%arg0: i32) -> (i32, i32) {
    %c0_i32 = arith.constant 0 : i32
    %c0_i32_0 = arith.constant 0 : i32
    return %arg0, %c0_i32 : i32, i32
  }
  func.func @transform_1(%arg0: i32) -> (i32, i32) {
    %c0_i32 = arith.constant 0 : i32
    %c0_i32_0 = arith.constant 0 : i32
    %c0_i32_1 = arith.constant 0 : i32
    return %c0_i32, %c0_i32_0 : i32, i32
  }
  func.func @transform_2(%arg0: i32) -> (i32, i32) {
    %c0_i32 = arith.constant 0 : i32
    %c0_i32_0 = arith.constant 0 : i32
    %c0_i32_1 = arith.constant 0 : i32
    return %c0_i32, %c0_i32_0 : i32, i32
  }
  func.func @transform_3(%arg0: i32) -> (i32, i32) {
    %c0_i32 = arith.constant 0 : i32
    %c0_i32_0 = arith.constant 0 : i32
    %c0_i32_1 = arith.constant 0 : i32
    return %c0_i32, %c0_i32_0 : i32, i32
  }
  func.func @transform_4(%arg0: i32) -> (i32, i32) {
    %c0_i32 = arith.constant 0 : i32
    %c0_i32_0 = arith.constant 0 : i32
    %c0_i32_1 = arith.constant 0 : i32
    return %c0_i32, %c0_i32_0 : i32, i32
  }
  func.func @transform_5(%arg0: i32) -> (i32, i32) {
    %c0_i32 = arith.constant 0 : i32
    %c0_i32_0 = arith.constant 0 : i32
    %c0_i32_1 = arith.constant 0 : i32
    return %c0_i32, %c0_i32_0 : i32, i32
  }
  func.func @transform_6(%arg0: i32) -> (i32, i32) {
    %c0_i32 = arith.constant 0 : i32
    %c0_i32_0 = arith.constant 0 : i32
    %c0_i32_1 = arith.constant 0 : i32
    return %c0_i32, %c0_i32_0 : i32, i32
  }
  func.func @transform_7(%arg0: i32) -> (i32, i32) {
    %c0_i32 = arith.constant 0 : i32
    %c0_i32_0 = arith.constant 0 : i32
    return %arg0, %c0_i32 : i32, i32
  }
}

</mosaic_0001>

<llo_original>
// kernel: _lambda_.1
$region0: #{_lambda_.1}
  #allocation0 [shape = 'u32[]', space=smem, size = 0x4, offset = 0x4, fixed_abs, tag = 'smem constant byte address 0x4 - core index']
  #allocation1 [shape = 'u32[72,128]{1,0:T(1,128)}', space=vmem, size = 0x9000, scoped, tag = 'internal scratch']
  %s0 = inlined_call_operand.vmem [shape: f32[4,32], index: 0, kind: input, shape index: {}]
  %s1 = inlined_call_operand.vmem [shape: f32[32,512], index: 1, kind: input, shape index: {}]
  %s2 = inlined_call_operand.vmem [shape: f32[1,512], index: 2, kind: input, shape index: {}]
  %s3 = inlined_call_operand.vmem [shape: f32[512,256], index: 3, kind: input, shape index: {}]
  %s4 = inlined_call_operand.vmem [shape: f32[1,256], index: 4, kind: input, shape index: {}]
  %s5 = inlined_call_operand.vmem [shape: f32[256,128], index: 5, kind: input, shape index: {}]
  %s6 = inlined_call_operand.vmem [shape: f32[1,128], index: 6, kind: input, shape index: {}]
  %s7 = inlined_call_operand.vmem [shape: f32[4,128], index: 7, kind: output, shape index: {}]
  %s8 = sld [smem:[#allocation0]]
  $region38: #{_lambda_.1} parent=0
    _
  %s10 = ssub.s32 1, %s8
  %s11 = scalar_select 0, %s10, %s8
  // Predicated region
  $region2: #{_lambda_.1} parent=0 // pred_check
    _
  $region3: #{_lambda_.1} parent=0 // pred_check_branch
    %13 = sbr.rel (0) target = $region5
  $region4: #{_lambda_.1} parent=0 // pred_region
    _
  $region5: #{_lambda_.1} parent=0 // pred_fallthru
    _
  // Predicated region
  $region6: #{_lambda_.1} parent=0 // pred_check
    _
  $region7: #{_lambda_.1} parent=0 // pred_check_branch
    %15 = sbr.rel (0) target = $region9
  $region8: #{_lambda_.1} parent=0 // pred_region
    _
  $region9: #{_lambda_.1} parent=0 // pred_fallthru
    _
  // Predicated region
  $region10: #{_lambda_.1} parent=0 // pred_check
    _
  $region11: #{_lambda_.1} parent=0 // pred_check_branch
    %17 = sbr.rel (0) target = $region13
  $region12: #{_lambda_.1} parent=0 // pred_region
    _
  $region13: #{_lambda_.1} parent=0 // pred_fallthru
    _
  // Predicated region
  $region14: #{_lambda_.1} parent=0 // pred_check
    _
  $region15: #{_lambda_.1} parent=0 // pred_check_branch
    %19 = sbr.rel (0) target = $region17
  $region16: #{_lambda_.1} parent=0 // pred_region
    _
  $region17: #{_lambda_.1} parent=0 // pred_fallthru
    _
  // Predicated region
  $region18: #{_lambda_.1} parent=0 // pred_check
    _
  $region19: #{_lambda_.1} parent=0 // pred_check_branch
    %21 = sbr.rel (0) target = $region21
  $region20: #{_lambda_.1} parent=0 // pred_region
    _
  $region21: #{_lambda_.1} parent=0 // pred_fallthru
    _
  // Predicated region
  $region22: #{_lambda_.1} parent=0 // pred_check
    _
  $region23: #{_lambda_.1} parent=0 // pred_check_branch
    %23 = sbr.rel (0) target = $region25
  $region24: #{_lambda_.1} parent=0 // pred_region
    _
  $region25: #{_lambda_.1} parent=0 // pred_fallthru
    _
  // Predicated region
  $region26: #{_lambda_.1} parent=0 // pred_check
    _
  $region27: #{_lambda_.1} parent=0 // pred_check_branch
    %25 = sbr.rel (0) target = $region29
  $region28: #{_lambda_.1} parent=0 // pred_region
    _
  $region29: #{_lambda_.1} parent=0 // pred_fallthru
    _
  %v26 = vld [vmem:[%s0] sm:$0xf]
  %v27 = vld [vmem:[%s1] sm:$0xff]
  %v28 = vld [vmem:[%s1 + $0x8] sm:$0xff]
  %v29 = vld [vmem:[%s1 + $0x10] sm:$0xff]
  %v30 = vld [vmem:[%s1 + $0x18] sm:$0xff]
  %v31 = vld [vmem:[%s1 + $0x20] sm:$0xff]
  %v32 = vld [vmem:[%s1 + $0x28] sm:$0xff]
  %v33 = vld [vmem:[%s1 + $0x30] sm:$0xff]
  %v34 = vld [vmem:[%s1 + $0x38] sm:$0xff]
  %v35 = vld [vmem:[%s1 + $0x40] sm:$0xff]
  %v36 = vld [vmem:[%s1 + $0x48] sm:$0xff]
  %v37 = vld [vmem:[%s1 + $0x50] sm:$0xff]
  %v38 = vld [vmem:[%s1 + $0x58] sm:$0xff]
  %v39 = vld [vmem:[%s1 + $0x60] sm:$0xff]
  %v40 = vld [vmem:[%s1 + $0x68] sm:$0xff]
  %v41 = vld [vmem:[%s1 + $0x70] sm:$0xff]
  %v42 = vld [vmem:[%s1 + $0x78] sm:$0xff]
  %v43 = vld [vmem:[%s2] sm:$0xf]
  %v45 = vperm.slane %v43, 0
  %v46 = vperm.slane %v43, 1
  %v47 = vperm.slane %v43, 2
  %v48 = vperm.slane %v43, 3
  %vm53 = vcmask 261120
  %v55 = vsel %vm53, %v26, 0
  %57 = vmatpush.msra.mxu0 0.0
  %58 = vmatpush.msra.mxu0 0.0
  %59 = vmatpush.msra.mxu0 0.0
  %60 = vmatpush.msra.mxu0 0.0
  %61 = vmatpush.msra.mxu0 0.0
  %62 = vmatpush.msra.mxu0 0.0
  %63 = vmatpush.msra.mxu0 0.0
  %64 = vmatpush.msra.mxu0 0.0
  %65 = vmatpush.msra.mxu0 0.0
  %66 = vmatpush.msra.mxu0 0.0
  %67 = vmatpush.msra.mxu0 0.0
  %68 = vmatpush.msra.mxu0 0.0
  %69 = vmatpush.msra.mxu0 %v39
  %70 = vmatpush.msra.mxu0 %v35
  %71 = vmatpush.msra.mxu0 %v31
  %72 = vmatpush.msra.mxu0 %v27
  %73 = vmatmul.f32.gmra.mxu0 %v55
  %v74 = vpop.f32.mrf.mxu0
  %v75 = vadd.f32 %v45, %v74
  %76 = vdwg.mxu0
  %77 = vmatpush.msra.mxu0 0.0
  %78 = vmatpush.msra.mxu0 0.0
  %79 = vmatpush.msra.mxu0 0.0
  %80 = vmatpush.msra.mxu0 0.0
  %81 = vmatpush.msra.mxu0 0.0
  %82 = vmatpush.msra.mxu0 0.0
  %83 = vmatpush.msra.mxu0 0.0
  %84 = vmatpush.msra.mxu0 0.0
  %85 = vmatpush.msra.mxu0 0.0
  %86 = vmatpush.msra.mxu0 0.0
  %87 = vmatpush.msra.mxu0 0.0
  %88 = vmatpush.msra.mxu0 0.0
  %89 = vmatpush.msra.mxu0 %v40
  %90 = vmatpush.msra.mxu0 %v36
  %91 = vmatpush.msra.mxu0 %v32
  %92 = vmatpush.msra.mxu0 %v28
  %93 = vmatmul.f32.gmra.mxu0 %v55
  %v94 = vpop.f32.mrf.mxu0
  %v95 = vadd.f32 %v46, %v94
  %96 = vdwg.mxu0
  %97 = vmatpush.msra.mxu0 0.0
  %98 = vmatpush.msra.mxu0 0.0
  %99 = vmatpush.msra.mxu0 0.0
  %100 = vmatpush.msra.mxu0 0.0
  %101 = vmatpush.msra.mxu0 0.0
  %102 = vmatpush.msra.mxu0 0.0
  %103 = vmatpush.msra.mxu0 0.0
  %104 = vmatpush.msra.mxu0 0.0
  %105 = vmatpush.msra.mxu0 0.0
  %106 = vmatpush.msra.mxu0 0.0
  %107 = vmatpush.msra.mxu0 0.0
  %108 = vmatpush.msra.mxu0 0.0
  %109 = vmatpush.msra.mxu0 %v41
  %110 = vmatpush.msra.mxu0 %v37
  %111 = vmatpush.msra.mxu0 %v33
  %112 = vmatpush.msra.mxu0 %v29
  %113 = vmatmul.f32.gmra.mxu0 %v55
  %v114 = vpop.f32.mrf.mxu0
  %v115 = vadd.f32 %v47, %v114
  %116 = vdwg.mxu0
  %117 = vmatpush.msra.mxu0 0.0
  %118 = vmatpush.msra.mxu0 0.0
  %119 = vmatpush.msra.mxu0 0.0
  %120 = vmatpush.msra.mxu0 0.0
  %121 = vmatpush.msra.mxu0 0.0
  %122 = vmatpush.msra.mxu0 0.0
  %123 = vmatpush.msra.mxu0 0.0
  %124 = vmatpush.msra.mxu0 0.0
  %125 = vmatpush.msra.mxu0 0.0
  %126 = vmatpush.msra.mxu0 0.0
  %127 = vmatpush.msra.mxu0 0.0
  %128 = vmatpush.msra.mxu0 0.0
  %129 = vmatpush.msra.mxu0 %v42
  %130 = vmatpush.msra.mxu0 %v38
  %131 = vmatpush.msra.mxu0 %v34
  %132 = vmatpush.msra.mxu0 %v30
  %133 = vmatmul.f32.gmra.mxu0 %v55
  %v134 = vpop.f32.mrf.mxu0
  %v135 = vadd.f32 %v48, %v134
  %136 = vdwg.mxu0
  %v137 = vmax.f32 %v75, 0.0
  %v138 = vmax.f32 %v95, 0.0
  %v139 = vmax.f32 %v115, 0.0
  %v140 = vmax.f32 %v135, 0.0
  %v141 = vld [vmem:[%s3] sm:$0xff]
  %v142 = vld [vmem:[%s3 + $0x8] sm:$0xff]
  %v143 = vld [vmem:[%s3 + $0x10] sm:$0xff]
  %v144 = vld [vmem:[%s3 + $0x18] sm:$0xff]
  %v145 = vld [vmem:[%s3 + $0x20] sm:$0xff]
  %v146 = vld [vmem:[%s3 + $0x28] sm:$0xff]
  %v147 = vld [vmem:[%s3 + $0x30] sm:$0xff]
  %v148 = vld [vmem:[%s3 + $0x38] sm:$0xff]
  %v149 = vld [vmem:[%s3 + $0x40] sm:$0xff]
  %v150 = vld [vmem:[%s3 + $0x48] sm:$0xff]
  %v151 = vld [vmem:[%s3 + $0x50] sm:$0xff]
  %v152 = vld [vmem:[%s3 + $0x58] sm:$0xff]
  %v153 = vld [vmem:[%s3 + $0x60] sm:$0xff]
  %v154 = vld [vmem:[%s3 + $0x68] sm:$0xff]
  %v155 = vld [vmem:[%s3 + $0x70] sm:$0xff]
  %v156 = vld [vmem:[%s3 + $0x78] sm:$0xff]
  %v157 = vld [vmem:[%s3 + $0x80] sm:$0xff]
  %v158 = vld [vmem:[%s3 + $0x88] sm:$0xff]
  %v159 = vld [vmem:[%s3 + $0x90] sm:$0xff]
  %v160 = vld [vmem:[%s3 + $0x98] sm:$0xff]
  %v161 = vld [vmem:[%s3 + $0xa0] sm:$0xff]
  %v162 = vld [vmem:[%s3 + $0xa8] sm:$0xff]
  %v163 = vld [vmem:[%s3 + $0xb0] sm:$0xff]
  %v164 = vld [vmem:[%s3 + $0xb8] sm:$0xff]
  %v165 = vld [vmem:[%s3 + $0xc0] sm:$0xff]
  %v166 = vld [vmem:[%s3 + $0xc8] sm:$0xff]
  %v167 = vld [vmem:[%s3 + $0xd0] sm:$0xff]
  %v168 = vld [vmem:[%s3 + $0xd8] sm:$0xff]
  %v169 = vld [vmem:[%s3 + $0xe0] sm:$0xff]
  %v170 = vld [vmem:[%s3 + $0xe8] sm:$0xff]
  %v171 = vld [vmem:[%s3 + $0xf0] sm:$0xff]
  %v172 = vld [vmem:[%s3 + $0xf8] sm:$0xff]
  %v173 = vld [vmem:[%s3 + $0x100] sm:$0xff]
  %v174 = vld [vmem:[%s3 + $0x108] sm:$0xff]
  %v175 = vld [vmem:[%s3 + $0x110] sm:$0xff]
  %v176 = vld [vmem:[%s3 + $0x118] sm:$0xff]
  %v177 = vld [vmem:[%s3 + $0x120] sm:$0xff]
  %v178 = vld [vmem:[%s3 + $0x128] sm:$0xff]
  %v179 = vld [vmem:[%s3 + $0x130] sm:$0xff]
  %v180 = vld [vmem:[%s3 + $0x138] sm:$0xff]
  %v181 = vld [vmem:[%s3 + $0x140] sm:$0xff]
  %v182 = vld [vmem:[%s3 + $0x148] sm:$0xff]
  %v183 = vld [vmem:[%s3 + $0x150] sm:$0xff]
  %v184 = vld [vmem:[%s3 + $0x158] sm:$0xff]
  %v185 = vld [vmem:[%s3 + $0x160] sm:$0xff]
  %v186 = vld [vmem:[%s3 + $0x168] sm:$0xff]
  %v187 = vld [vmem:[%s3 + $0x170] sm:$0xff]
  %v188 = vld [vmem:[%s3 + $0x178] sm:$0xff]
  %v189 = vld [vmem:[%s3 + $0x180] sm:$0xff]
  %v190 = vld [vmem:[%s3 + $0x188] sm:$0xff]
  %v191 = vld [vmem:[%s3 + $0x190] sm:$0xff]
  %v192 = vld [vmem:[%s3 + $0x198] sm:$0xff]
  %v193 = vld [vmem:[%s3 + $0x1a0] sm:$0xff]
  %v194 = vld [vmem:[%s3 + $0x1a8] sm:$0xff]
  %v195 = vld [vmem:[%s3 + $0x1b0] sm:$0xff]
  %v196 = vld [vmem:[%s3 + $0x1b8] sm:$0xff]
  %v197 = vld [vmem:[%s3 + $0x1c0] sm:$0xff]
  %v198 = vld [vmem:[%s3 + $0x1c8] sm:$0xff]
  %v199 = vld [vmem:[%s3 + $0x1d0] sm:$0xff]
  %v200 = vld [vmem:[%s3 + $0x1d8] sm:$0xff]
  %v201 = vld [vmem:[%s3 + $0x1e0] sm:$0xff]
  %v202 = vld [vmem:[%s3 + $0x1e8] sm:$0xff]
  %v203 = vld [vmem:[%s3 + $0x1f0] sm:$0xff]
  %v204 = vld [vmem:[%s3 + $0x1f8] sm:$0xff]
  %v205 = vld [vmem:[%s3 + $0x200] sm:$0xff]
  %v206 = vld [vmem:[%s3 + $0x208] sm:$0xff]
  %v207 = vld [vmem:[%s3 + $0x210] sm:$0xff]
  %v208 = vld [vmem:[%s3 + $0x218] sm:$0xff]
  %v209 = vld [vmem:[%s3 + $0x220] sm:$0xff]
  %v210 = vld [vmem:[%s3 + $0x228] sm:$0xff]
  %v211 = vld [vmem:[%s3 + $0x230] sm:$0xff]
  %v212 = vld [vmem:[%s3 + $0x238] sm:$0xff]
  %v213 = vld [vmem:[%s3 + $0x240] sm:$0xff]
  %v214 = vld [vmem:[%s3 + $0x248] sm:$0xff]
  %v215 = vld [vmem:[%s3 + $0x250] sm:$0xff]
  %v216 = vld [vmem:[%s3 + $0x258] sm:$0xff]
  %v217 = vld [vmem:[%s3 + $0x260] sm:$0xff]
  %v218 = vld [vmem:[%s3 + $0x268] sm:$0xff]
  %v219 = vld [vmem:[%s3 + $0x270] sm:$0xff]
  %v220 = vld [vmem:[%s3 + $0x278] sm:$0xff]
  %v221 = vld [vmem:[%s3 + $0x280] sm:$0xff]
  %v222 = vld [vmem:[%s3 + $0x288] sm:$0xff]
  %v223 = vld [vmem:[%s3 + $0x290] sm:$0xff]
  %v224 = vld [vmem:[%s3 + $0x298] sm:$0xff]
  %v225 = vld [vmem:[%s3 + $0x2a0] sm:$0xff]
  %v226 = vld [vmem:[%s3 + $0x2a8] sm:$0xff]
  %v227 = vld [vmem:[%s3 + $0x2b0] sm:$0xff]
  %v228 = vld [vmem:[%s3 + $0x2b8] sm:$0xff]
  %v229 = vld [vmem:[%s3 + $0x2c0] sm:$0xff]
  %v230 = vld [vmem:[%s3 + $0x2c8] sm:$0xff]
  %v231 = vld [vmem:[%s3 + $0x2d0] sm:$0xff]
  %v232 = vld [vmem:[%s3 + $0x2d8] sm:$0xff]
  %v233 = vld [vmem:[%s3 + $0x2e0] sm:$0xff]
  %v234 = vld [vmem:[%s3 + $0x2e8] sm:$0xff]
  %v235 = vld [vmem:[%s3 + $0x2f0] sm:$0xff]
  %v236 = vld [vmem:[%s3 + $0x2f8] sm:$0xff]
  %v237 = vld [vmem:[%s3 + $0x300] sm:$0xff]
  %v238 = vld [vmem:[%s3 + $0x308] sm:$0xff]
  %v239 = vld [vmem:[%s3 + $0x310] sm:$0xff]
  %v240 = vld [vmem:[%s3 + $0x318] sm:$0xff]
  %v241 = vld [vmem:[%s3 + $0x320] sm:$0xff]
  %v242 = vld [vmem:[%s3 + $0x328] sm:$0xff]
  %v243 = vld [vmem:[%s3 + $0x330] sm:$0xff]
  %v244 = vld [vmem:[%s3 + $0x338] sm:$0xff]
  %v245 = vld [vmem:[%s3 + $0x340] sm:$0xff]
  %v246 = vld [vmem:[%s3 + $0x348] sm:$0xff]
  %v247 = vld [vmem:[%s3 + $0x350] sm:$0xff]
  %v248 = vld [vmem:[%s3 + $0x358] sm:$0xff]
  %v249 = vld [vmem:[%s3 + $0x360] sm:$0xff]
  %v250 = vld [vmem:[%s3 + $0x368] sm:$0xff]
  %v251 = vld [vmem:[%s3 + $0x370] sm:$0xff]
  %v252 = vld [vmem:[%s3 + $0x378] sm:$0xff]
  %v253 = vld [vmem:[%s3 + $0x380] sm:$0xff]
  %v254 = vld [vmem:[%s3 + $0x388] sm:$0xff]
  %v255 = vld [vmem:[%s3 + $0x390] sm:$0xff]
  %v256 = vld [vmem:[%s3 + $0x398] sm:$0xff]
  %v257 = vld [vmem:[%s3 + $0x3a0] sm:$0xff]
  %v258 = vld [vmem:[%s3 + $0x3a8] sm:$0xff]
  %v259 = vld [vmem:[%s3 + $0x3b0] sm:$0xff]
  %v260 = vld [vmem:[%s3 + $0x3b8] sm:$0xff]
  %v261 = vld [vmem:[%s3 + $0x3c0] sm:$0xff]
  %v262 = vld [vmem:[%s3 + $0x3c8] sm:$0xff]
  %v263 = vld [vmem:[%s3 + $0x3d0] sm:$0xff]
  %v264 = vld [vmem:[%s3 + $0x3d8] sm:$0xff]
  %v265 = vld [vmem:[%s3 + $0x3e0] sm:$0xff]
  %v266 = vld [vmem:[%s3 + $0x3e8] sm:$0xff]
  %v267 = vld [vmem:[%s3 + $0x3f0] sm:$0xff]
  %v268 = vld [vmem:[%s3 + $0x3f8] sm:$0xff]
  %v269 = vld [vmem:[%s4] sm:$0x3]
  %v271 = vperm.slane %v269, 0
  %v272 = vperm.slane %v269, 1
  %275 = vmatpush.msra.mxu0 %v171
  %276 = vmatpush.msra.mxu0 %v169
  %277 = vmatpush.msra.mxu0 %v167
  %278 = vmatpush.msra.mxu0 %v165
  %279 = vmatpush.msra.mxu0 %v163
  %280 = vmatpush.msra.mxu0 %v161
  %281 = vmatpush.msra.mxu0 %v159
  %282 = vmatpush.msra.mxu0 %v157
  %283 = vmatpush.msra.mxu0 %v155
  %284 = vmatpush.msra.mxu0 %v153
  %285 = vmatpush.msra.mxu0 %v151
  %286 = vmatpush.msra.mxu0 %v149
  %287 = vmatpush.msra.mxu0 %v147
  %288 = vmatpush.msra.mxu0 %v145
  %289 = vmatpush.msra.mxu0 %v143
  %290 = vmatpush.msra.mxu0 %v141
  %291 = vmatmul.f32.gmra.mxu0 %v137
  %v292 = vpop.f32.mrf.mxu0
  %v293 = vadd.f32 %v271, %v292
  %294 = vdwg.mxu0
  %295 = vmatpush.msra.mxu0 %v203
  %296 = vmatpush.msra.mxu0 %v201
  %297 = vmatpush.msra.mxu0 %v199
  %298 = vmatpush.msra.mxu0 %v197
  %299 = vmatpush.msra.mxu0 %v195
  %300 = vmatpush.msra.mxu0 %v193
  %301 = vmatpush.msra.mxu0 %v191
  %302 = vmatpush.msra.mxu0 %v189
  %303 = vmatpush.msra.mxu0 %v187
  %304 = vmatpush.msra.mxu0 %v185
  %305 = vmatpush.msra.mxu0 %v183
  %306 = vmatpush.msra.mxu0 %v181
  %307 = vmatpush.msra.mxu0 %v179
  %308 = vmatpush.msra.mxu0 %v177
  %309 = vmatpush.msra.mxu0 %v175
  %310 = vmatpush.msra.mxu0 %v173
  %311 = vmatmul.f32.gmra.mxu0 %v138
  %v312 = vpop.f32.mrf.mxu0
  %v313 = vadd.f32 %v293, %v312
  %314 = vdwg.mxu0
  %315 = vmatpush.msra.mxu0 %v235
  %316 = vmatpush.msra.mxu0 %v233
  %317 = vmatpush.msra.mxu0 %v231
  %318 = vmatpush.msra.mxu0 %v229
  %319 = vmatpush.msra.mxu0 %v227
  %320 = vmatpush.msra.mxu0 %v225
  %321 = vmatpush.msra.mxu0 %v223
  %322 = vmatpush.msra.mxu0 %v221
  %323 = vmatpush.msra.mxu0 %v219
  %324 = vmatpush.msra.mxu0 %v217
  %325 = vmatpush.msra.mxu0 %v215
  %326 = vmatpush.msra.mxu0 %v213
  %327 = vmatpush.msra.mxu0 %v211
  %328 = vmatpush.msra.mxu0 %v209
  %329 = vmatpush.msra.mxu0 %v207
  %330 = vmatpush.msra.mxu0 %v205
  %331 = vmatmul.f32.gmra.mxu0 %v139
  %v332 = vpop.f32.mrf.mxu0
  %v333 = vadd.f32 %v313, %v332
  %334 = vdwg.mxu0
  %335 = vmatpush.msra.mxu0 %v267
  %336 = vmatpush.msra.mxu0 %v265
  %337 = vmatpush.msra.mxu0 %v263
  %338 = vmatpush.msra.mxu0 %v261
  %339 = vmatpush.msra.mxu0 %v259
  %340 = vmatpush.msra.mxu0 %v257
  %341 = vmatpush.msra.mxu0 %v255
  %342 = vmatpush.msra.mxu0 %v253
  %343 = vmatpush.msra.mxu0 %v251
  %344 = vmatpush.msra.mxu0 %v249
  %345 = vmatpush.msra.mxu0 %v247
  %346 = vmatpush.msra.mxu0 %v245
  %347 = vmatpush.msra.mxu0 %v243
  %348 = vmatpush.msra.mxu0 %v241
  %349 = vmatpush.msra.mxu0 %v239
  %350 = vmatpush.msra.mxu0 %v237
  %351 = vmatmul.f32.gmra.mxu0 %v140
  %v352 = vpop.f32.mrf.mxu0
  %v353 = vadd.f32 %v333, %v352
  %354 = vdwg.mxu0
  %355 = vmatpush.msra.mxu0 %v172
  %356 = vmatpush.msra.mxu0 %v170
  %357 = vmatpush.msra.mxu0 %v168
  %358 = vmatpush.msra.mxu0 %v166
  %359 = vmatpush.msra.mxu0 %v164
  %360 = vmatpush.msra.mxu0 %v162
  %361 = vmatpush.msra.mxu0 %v160
  %362 = vmatpush.msra.mxu0 %v158
  %363 = vmatpush.msra.mxu0 %v156
  %364 = vmatpush.msra.mxu0 %v154
  %365 = vmatpush.msra.mxu0 %v152
  %366 = vmatpush.msra.mxu0 %v150
  %367 = vmatpush.msra.mxu0 %v148
  %368 = vmatpush.msra.mxu0 %v146
  %369 = vmatpush.msra.mxu0 %v144
  %370 = vmatpush.msra.mxu0 %v142
  %371 = vmatmul.f32.gmra.mxu0 %v137
  %v372 = vpop.f32.mrf.mxu0
  %v373 = vadd.f32 %v272, %v372
  %374 = vdwg.mxu0
  %375 = vmatpush.msra.mxu0 %v204
  %376 = vmatpush.msra.mxu0 %v202
  %377 = vmatpush.msra.mxu0 %v200
  %378 = vmatpush.msra.mxu0 %v198
  %379 = vmatpush.msra.mxu0 %v196
  %380 = vmatpush.msra.mxu0 %v194
  %381 = vmatpush.msra.mxu0 %v192
  %382 = vmatpush.msra.mxu0 %v190
  %383 = vmatpush.msra.mxu0 %v188
  %384 = vmatpush.msra.mxu0 %v186
  %385 = vmatpush.msra.mxu0 %v184
  %386 = vmatpush.msra.mxu0 %v182
  %387 = vmatpush.msra.mxu0 %v180
  %388 = vmatpush.msra.mxu0 %v178
  %389 = vmatpush.msra.mxu0 %v176
  %390 = vmatpush.msra.mxu0 %v174
  %391 = vmatmul.f32.gmra.mxu0 %v138
  %v392 = vpop.f32.mrf.mxu0
  %v393 = vadd.f32 %v373, %v392
  %394 = vdwg.mxu0
  %395 = vmatpush.msra.mxu0 %v236
  %396 = vmatpush.msra.mxu0 %v234
  %397 = vmatpush.msra.mxu0 %v232
  %398 = vmatpush.msra.mxu0 %v230
  %399 = vmatpush.msra.mxu0 %v228
  %400 = vmatpush.msra.mxu0 %v226
  %401 = vmatpush.msra.mxu0 %v224
  %402 = vmatpush.msra.mxu0 %v222
  %403 = vmatpush.msra.mxu0 %v220
  %404 = vmatpush.msra.mxu0 %v218
  %405 = vmatpush.msra.mxu0 %v216
  %406 = vmatpush.msra.mxu0 %v214
  %407 = vmatpush.msra.mxu0 %v212
  %408 = vmatpush.msra.mxu0 %v210
  %409 = vmatpush.msra.mxu0 %v208
  %410 = vmatpush.msra.mxu0 %v206
  %411 = vmatmul.f32.gmra.mxu0 %v139
  %v412 = vpop.f32.mrf.mxu0
  %v413 = vadd.f32 %v393, %v412
  %414 = vdwg.mxu0
  %415 = vmatpush.msra.mxu0 %v268
  %416 = vmatpush.msra.mxu0 %v266
  %417 = vmatpush.msra.mxu0 %v264
  %418 = vmatpush.msra.mxu0 %v262
  %419 = vmatpush.msra.mxu0 %v260
  %420 = vmatpush.msra.mxu0 %v258
  %421 = vmatpush.msra.mxu0 %v256
  %422 = vmatpush.msra.mxu0 %v254
  %423 = vmatpush.msra.mxu0 %v252
  %424 = vmatpush.msra.mxu0 %v250
  %425 = vmatpush.msra.mxu0 %v248
  %426 = vmatpush.msra.mxu0 %v246
  %427 = vmatpush.msra.mxu0 %v244
  %428 = vmatpush.msra.mxu0 %v242
  %429 = vmatpush.msra.mxu0 %v240
  %430 = vmatpush.msra.mxu0 %v238
  %431 = vmatmul.f32.gmra.mxu0 %v140
  %v432 = vpop.f32.mrf.mxu0
  %v433 = vadd.f32 %v413, %v432
  %434 = vdwg.mxu0
  %v435 = vmax.f32 %v353, 0.0
  %v436 = vmax.f32 %v433, 0.0
  %v437 = vld [vmem:[%s5] sm:$0xff]
  %v438 = vld [vmem:[%s5 + $0x8] sm:$0xff]
  %v439 = vld [vmem:[%s5 + $0x10] sm:$0xff]
  %v440 = vld [vmem:[%s5 + $0x18] sm:$0xff]
  %v441 = vld [vmem:[%s5 + $0x20] sm:$0xff]
  %v442 = vld [vmem:[%s5 + $0x28] sm:$0xff]
  %v443 = vld [vmem:[%s5 + $0x30] sm:$0xff]
  %v444 = vld [vmem:[%s5 + $0x38] sm:$0xff]
  %v445 = vld [vmem:[%s5 + $0x40] sm:$0xff]
  %v446 = vld [vmem:[%s5 + $0x48] sm:$0xff]
  %v447 = vld [vmem:[%s5 + $0x50] sm:$0xff]
  %v448 = vld [vmem:[%s5 + $0x58] sm:$0xff]
  %v449 = vld [vmem:[%s5 + $0x60] sm:$0xff]
  %v450 = vld [vmem:[%s5 + $0x68] sm:$0xff]
  %v451 = vld [vmem:[%s5 + $0x70] sm:$0xff]
  %v452 = vld [vmem:[%s5 + $0x78] sm:$0xff]
  %v453 = vld [vmem:[%s5 + $0x80] sm:$0xff]
  %v454 = vld [vmem:[%s5 + $0x88] sm:$0xff]
  %v455 = vld [vmem:[%s5 + $0x90] sm:$0xff]
  %v456 = vld [vmem:[%s5 + $0x98] sm:$0xff]
  %v457 = vld [vmem:[%s5 + $0xa0] sm:$0xff]
  %v458 = vld [vmem:[%s5 + $0xa8] sm:$0xff]
  %v459 = vld [vmem:[%s5 + $0xb0] sm:$0xff]
  %v460 = vld [vmem:[%s5 + $0xb8] sm:$0xff]
  %v461 = vld [vmem:[%s5 + $0xc0] sm:$0xff]
  %v462 = vld [vmem:[%s5 + $0xc8] sm:$0xff]
  %v463 = vld [vmem:[%s5 + $0xd0] sm:$0xff]
  %v464 = vld [vmem:[%s5 + $0xd8] sm:$0xff]
  %v465 = vld [vmem:[%s5 + $0xe0] sm:$0xff]
  %v466 = vld [vmem:[%s5 + $0xe8] sm:$0xff]
  %v467 = vld [vmem:[%s5 + $0xf0] sm:$0xff]
  %v468 = vld [vmem:[%s5 + $0xf8] sm:$0xff]
  %v469 = vld [vmem:[%s6] sm:$0x1]
  %v471 = vperm.slane %v469, 0
  %473 = vmatpush.msra.mxu0 %v452
  %474 = vmatpush.msra.mxu0 %v451
  %475 = vmatpush.msra.mxu0 %v450
  %476 = vmatpush.msra.mxu0 %v449
  %477 = vmatpush.msra.mxu0 %v448
  %478 = vmatpush.msra.mxu0 %v447
  %479 = vmatpush.msra.mxu0 %v446
  %480 = vmatpush.msra.mxu0 %v445
  %481 = vmatpush.msra.mxu0 %v444
  %482 = vmatpush.msra.mxu0 %v443
  %483 = vmatpush.msra.mxu0 %v442
  %484 = vmatpush.msra.mxu0 %v441
  %485 = vmatpush.msra.mxu0 %v440
  %486 = vmatpush.msra.mxu0 %v439
  %487 = vmatpush.msra.mxu0 %v438
  %488 = vmatpush.msra.mxu0 %v437
  %489 = vmatmul.f32.gmra.mxu0 %v435
  %v490 = vpop.f32.mrf.mxu0
  %v491 = vadd.f32 %v471, %v490
  %492 = vdwg.mxu0
  %493 = vmatpush.msra.mxu0 %v468
  %494 = vmatpush.msra.mxu0 %v467
  %495 = vmatpush.msra.mxu0 %v466
  %496 = vmatpush.msra.mxu0 %v465
  %497 = vmatpush.msra.mxu0 %v464
  %498 = vmatpush.msra.mxu0 %v463
  %499 = vmatpush.msra.mxu0 %v462
  %500 = vmatpush.msra.mxu0 %v461
  %501 = vmatpush.msra.mxu0 %v460
  %502 = vmatpush.msra.mxu0 %v459
  %503 = vmatpush.msra.mxu0 %v458
  %504 = vmatpush.msra.mxu0 %v457
  %505 = vmatpush.msra.mxu0 %v456
  %506 = vmatpush.msra.mxu0 %v455
  %507 = vmatpush.msra.mxu0 %v454
  %508 = vmatpush.msra.mxu0 %v453
  %509 = vmatmul.f32.gmra.mxu0 %v436
  %v510 = vpop.f32.mrf.mxu0
  %v511 = vadd.f32 %v491, %v510
  %512 = vdwg.mxu0
  %v513 = vmax.f32 %v511, 0.0
  %514 = vst [vmem:[%s7] sm:$0xf] %v513
  // Predicated region
  $region30: #{_lambda_.1} parent=0 // pred_check
    _
  $region31: #{_lambda_.1} parent=0 // pred_check_branch
    %516 = sbr.rel (0) target = $region33
  $region32: #{_lambda_.1} parent=0 // pred_region
    _
  $region33: #{_lambda_.1} parent=0 // pred_fallthru
    _
  // Predicated region
  $region34: #{_lambda_.1} parent=0 // pred_check
    _
  $region35: #{_lambda_.1} parent=0 // pred_check_branch
    %518 = sbr.rel (0) target = $region37
  $region36: #{_lambda_.1} parent=0 // pred_region
    _
  $region37: #{_lambda_.1} parent=0 // pred_fallthru
    _

</llo_original>
